<compile_context>
chip_gen: v7x
topology: tpu7x:2x2x1
jax: 0.10.0
libtpu: 0.0.40
codegen_flags: <defaults>
</compile_context>

<pallas_src>
import functools

import jax
import jax.numpy as jnp
from jax.experimental import pallas as pl
from jax.experimental.pallas import tpu as pltpu


# --------------------------------------------------------------------------- #
# Kernel                                                                      #
# --------------------------------------------------------------------------- #
def _mean_pooling_kernel(h_ref, m_ref, cnt_ref, o_ref, acc_ref):
    # h_ref:   (tb, ts, th)  hidden tile, input dtype (f32 or bf16)
    # m_ref:   (tb, ts, 1)   mask tile, same dtype as h (values exactly 0/1)
    # cnt_ref: (tb, 1)       f32 clamped token counts (precomputed in XLA)
    # o_ref:   (tb, th)      f32 output tile (written once, at the last S step)
    # acc_ref: (tb, th)      f32 scratch accumulator, resident across the S axis
    s = pl.program_id(2)

    @pl.when(s == 0)
    def _init():
        acc_ref[...] = jnp.zeros_like(acc_ref)

    # Multiply in the input dtype (mask is 0/1 -> exact); accumulate the
    # S-tile reduction in f32.  No f32 copy of the hidden tile is materialized.
    masked = h_ref[...] * m_ref[...]
    acc_ref[...] += jnp.sum(masked, axis=1, dtype=jnp.float32)

    @pl.when(s == pl.num_programs(2) - 1)
    def _finalize():
        # Exact divide, once per output tile (counts already clamped >= 1e-9).
        o_ref[...] = (acc_ref[...] / cnt_ref[...]).astype(o_ref.dtype)


# --------------------------------------------------------------------------- #
# Tile / VMEM heuristics                                                      #
# --------------------------------------------------------------------------- #
def _round_up(n, m):
    return -(-n // m) * m


@functools.lru_cache(maxsize=None)
def _vmem_capacity_bytes():
    try:
        return int(pltpu.get_tpu_info().vmem_capacity_bytes)
    except Exception:  # conservative fallback = v7x per-TC VMEM
        return 64 * 1024 * 1024


def _pick_tile(dim, align, fits):
    """Largest t dividing `dim` (t == dim, or t a multiple of `align`) with fits(t)."""
    if fits(dim):
        return dim
    t = (dim // align) * align
    if t == dim:
        t -= align
    while t >= align:
        if dim % t == 0 and fits(t):
            return t
        t -= align
    return dim  # nothing smaller divides/fits: fall back to the full extent


def _tile_bytes(tb, ts, th, itemsize, sub):
    """Estimated VMEM per grid step (double-buffered operands + scratch)."""
    hid = 2 * tb * _round_up(ts, sub) * _round_up(th, 128) * itemsize
    msk = 2 * tb * _round_up(ts, sub) * 128 * itemsize   # (tb,ts,1): lane-pads to 128
    cnt = 2 * _round_up(tb, 8) * 128 * 4
    out = 2 * _round_up(tb, 8) * _round_up(th, 128) * 4
    acc = _round_up(tb, 8) * _round_up(th, 128) * 4
    return hid + msk + cnt + out + acc


def _auto_tiles(B, S, H, itemsize, budget):
    sub = max(8, 32 // itemsize)              # sublane pack: 8 (f32) / 16 (bf16)
    tb = _pick_tile(B, 8, lambda t: t <= 8)   # <= 8 batch rows per tile
    size = lambda ts, th: _tile_bytes(tb, ts, th, itemsize, sub)
    min_ts = S if S <= sub else sub
    # Prefer th = H (contiguous hidden-row DMAs, mask fetched once per (b, s)
    # tile, lane-dense output); only tile H if even a minimal S tile won't fit.
    th = _pick_tile(H, 128, lambda t: size(min_ts, t) <= budget)
    # Grow the S tile until the VMEM budget is reached: big per-step DMAs
    # amortize the ~0.35 us grid-step overhead (v5e/v6e's larger VMEM
    # automatically buys larger tiles than v7x's 64 MiB).
    ts = _pick_tile(S, sub, lambda t: size(t, th) <= budget)
    return tb, ts, th


# --------------------------------------------------------------------------- #
# Wrapper                                                                     #
# --------------------------------------------------------------------------- #
@functools.partial(jax.jit, static_argnames=("tb", "ts", "th"))
def mean_pooling(last_hidden_state, attention_mask, *, tb=None, ts=None, th=None):
    """Masked mean pooling over axis 1 (sequence). Returns float32 (B, H)."""
    B, S, H = last_hidden_state.shape
    assert attention_mask.shape == (B, S)
    h_dtype = last_hidden_state.dtype
    itemsize = jnp.dtype(h_dtype).itemsize

    capacity = _vmem_capacity_bytes()
    atb, ats, ath = _auto_tiles(B, S, H, itemsize, int(capacity * 0.6))
    tb = atb if tb is None else tb
    ts = ats if ts is None else ts
    th = ath if th is None else th
    grid = (B // tb, H // th, S // ts)

    # Mask in the hidden dtype (exact for 0/1), S on sublanes like the hidden tile.
    mask3 = attention_mask[:, :, None].astype(h_dtype)
    # Token counts: computed once in XLA, clamped like torch.clamp(min=1e-9).
    counts = jnp.maximum(
        jnp.sum(attention_mask.astype(jnp.float32), axis=1, keepdims=True), 1e-9)

    return pl.pallas_call(
        _mean_pooling_kernel,
        out_shape=jax.ShapeDtypeStruct((B, H), jnp.float32),
        grid_spec=pltpu.PrefetchScalarGridSpec(
            num_scalar_prefetch=0,
            grid=grid,
            in_specs=[
                pl.BlockSpec((tb, ts, th), lambda b, h, s: (b, s, h)),
                pl.BlockSpec((tb, ts, 1), lambda b, h, s: (b, s, 0)),  # no H dep
                pl.BlockSpec((tb, 1), lambda b, h, s: (b, 0)),         # resident per b
            ],
            out_specs=pl.BlockSpec((tb, th), lambda b, h, s: (b, h)),  # resident over S
            scratch_shapes=[pltpu.VMEM((tb, th), jnp.float32)],
        ),
        compiler_params=pltpu.CompilerParams(
            dimension_semantics=("parallel", "parallel", "arbitrary"),
            vmem_limit_bytes=int(capacity * 0.9),
        ),
    )(last_hidden_state, mask3, counts)


def mean_pooling_ref(last_hidden_state, attention_mask):
    # Pure-JAX reference mirroring the PyTorch forward exactly.
    m = attention_mask[:, :, None].astype(jnp.float32)
    m = jnp.broadcast_to(m, last_hidden_state.shape)
    sum_embeddings = jnp.sum(last_hidden_state.astype(jnp.float32) * m, axis=1)
    sum_mask = jnp.clip(jnp.sum(m, axis=1), 1e-9, None)
    return sum_embeddings / sum_mask


if __name__ == "__main__":
    key = jax.random.PRNGKey(0)
    k1, k2, k3, k4 = jax.random.split(key, 4)

    # --- Test 1: small shape consistent with the module (single-block grid) ---
    B, S, H = 2, 8, 32
    h = jax.random.normal(k1, (B, S, H), dtype=jnp.float32)
    m = (jax.random.uniform(k2, (B, S)) > 0.3).astype(jnp.int32)
    m = m.at[:, -2:].set(0)                      # some padding positions
    out = jax.block_until_ready(mean_pooling(h, m))
    ref = mean_pooling_ref(h, m)
    assert out.shape == (B, H) and out.dtype == jnp.float32
    assert jnp.allclose(out, ref, atol=2e-3, rtol=5e-3), "mismatch vs reference (f32 small)"

    # --- Test 2: multi-tile grid (H tiled, several S steps, resident accumulator) ---
    B2, S2, H2 = 4, 256, 256
    h2 = jax.random.normal(k3, (B2, S2, H2), dtype=jnp.float32)
    m2 = (jax.random.uniform(k4, (B2, S2)) > 0.5).astype(jnp.int32)
    m2 = m2.at[0].set(0)                         # all-padding row -> exercises the clamp
    out2 = jax.block_until_ready(mean_pooling(h2, m2, tb=4, ts=128, th=128))
    ref2 = mean_pooling_ref(h2, m2)
    assert jnp.allclose(out2, ref2, atol=2e-3, rtol=5e-3), "mismatch vs reference (f32 grid)"

    # --- Test 3: bf16 hidden states (bf16 multiply, f32 accumulation) ---
    h2_bf16 = h2.astype(jnp.bfloat16)
    out3 = jax.block_until_ready(mean_pooling(h2_bf16, m2, tb=4, ts=128, th=128))
    ref3 = mean_pooling_ref(h2_bf16.astype(jnp.float32), m2)
    assert jnp.allclose(out3, ref3, atol=2e-2, rtol=2e-2), "mismatch vs reference (bf16)"

    print("KERNEL_OK")
</pallas_src>

<mosaic_0001>
module attributes {stable_mosaic.version = 11 : i64} {
  func.func @_mean_pooling_kernel(%arg0: i32, %arg1: i32, %arg2: i32, %arg3: memref<2x8x32xf32, #tpu.memory_space<vmem>>, %arg4: memref<2x8x1xf32, #tpu.memory_space<vmem>>, %arg5: memref<2x1xf32, #tpu.memory_space<vmem>>, %arg6: memref<2x32xf32, #tpu.memory_space<vmem>>, %arg7: memref<2x32xf32, #tpu.memory_space<vmem>>) attributes {dimension_semantics = [#tpu.dimension_semantics<parallel>, #tpu.dimension_semantics<parallel>, #tpu.dimension_semantics<arbitrary>], iteration_bounds = array<i64: 1, 1, 1>, scalar_prefetch = 0 : i64, scratch_operands = 1 : i64, tpu.core_type = #tpu.core_type<tc>, window_params = [{transform_indices = @transform_0, window_bounds = array<i64: 2, 8, 32>}, {transform_indices = @transform_1, window_bounds = array<i64: 2, 8, 1>}, {transform_indices = @transform_2, window_bounds = array<i64: 2, 1>}, {transform_indices = @transform_3, window_bounds = array<i64: 2, 32>}]} {
    %c0_i32 = arith.constant 0 : i32
    %0 = arith.cmpi eq, %arg2, %c0_i32 : i32
    %1 = arith.extui %0 : i1 to i32
    %c0_i32_0 = arith.constant 0 : i32
    %2 = arith.cmpi ne, %1, %c0_i32_0 : i32
    scf.if %2 {
      %cst_12 = arith.constant 0.000000e+00 : f32
      %14 = vector.broadcast %cst_12 : f32 to vector<2x32xf32>
      %c0_13 = arith.constant 0 : index
      %c0_14 = arith.constant 0 : index
      %15 = vector.load %arg7[%c0_13, %c0_14] : memref<2x32xf32, #tpu.memory_space<vmem>>, vector<2x32xf32>
      tpu.vector_store %arg7[%c0_13, %c0_14], %14 {strides = array<i32>} : memref<2x32xf32, #tpu.memory_space<vmem>>, vector<2x32xf32>,
    } else {
    }
    %c0 = arith.constant 0 : index
    %c0_1 = arith.constant 0 : index
    %c0_2 = arith.constant 0 : index
    %3 = vector.load %arg3[%c0, %c0_1, %c0_2] : memref<2x8x32xf32, #tpu.memory_space<vmem>>, vector<2x8x32xf32>
    %c0_3 = arith.constant 0 : index
    %c0_4 = arith.constant 0 : index
    %c0_5 = arith.constant 0 : index
    %4 = vector.load %arg4[%c0_3, %c0_4, %c0_5] : memref<2x8x1xf32, #tpu.memory_space<vmem>>, vector<2x8x1xf32>
    %5 = vector.broadcast %4 : vector<2x8x1xf32> to vector<2x8x32xf32>
    %6 = arith.mulf %3, %5 : vector<2x8x32xf32>
    %c0_6 = arith.constant 0 : index
    %c0_7 = arith.constant 0 : index
    %7 = vector.load %arg7[%c0_6, %c0_7] : memref<2x32xf32, #tpu.memory_space<vmem>>, vector<2x32xf32>
    %cst = arith.constant dense<0.000000e+00> : vector<2x32xf32>
    %8 = vector.multi_reduction <add>, %6, %cst [1] : vector<2x8x32xf32> to vector<2x32xf32>
    %9 = arith.addf %7, %8 : vector<2x32xf32>
    %c0_8 = arith.constant 0 : index
    %c0_9 = arith.constant 0 : index
    %10 = vector.load %arg7[%c0_8, %c0_9] : memref<2x32xf32, #tpu.memory_space<vmem>>, vector<2x32xf32>
    tpu.vector_store %arg7[%c0_8, %c0_9], %9 {strides = array<i32>} : memref<2x32xf32, #tpu.memory_space<vmem>>, vector<2x32xf32>,
    %c0_i32_10 = arith.constant 0 : i32
    %11 = arith.cmpi eq, %arg2, %c0_i32_10 : i32
    %12 = arith.extui %11 : i1 to i32
    %c0_i32_11 = arith.constant 0 : i32
    %13 = arith.cmpi ne, %12, %c0_i32_11 : i32
    scf.if %13 {
      %c0_12 = arith.constant 0 : index
      %c0_13 = arith.constant 0 : index
      %14 = vector.load %arg7[%c0_12, %c0_13] : memref<2x32xf32, #tpu.memory_space<vmem>>, vector<2x32xf32>
      %c0_14 = arith.constant 0 : index
      %c0_15 = arith.constant 0 : index
      %15 = vector.load %arg5[%c0_14, %c0_15] : memref<2x1xf32, #tpu.memory_space<vmem>>, vector<2x1xf32>
      %16 = vector.broadcast %15 : vector<2x1xf32> to vector<2x32xf32>
      %17 = arith.divf %14, %16 : vector<2x32xf32>
      %c0_16 = arith.constant 0 : index
      %c0_17 = arith.constant 0 : index
      %18 = vector.load %arg6[%c0_16, %c0_17] : memref<2x32xf32, #tpu.memory_space<vmem>>, vector<2x32xf32>
      tpu.vector_store %arg6[%c0_16, %c0_17], %17 {strides = array<i32>} : memref<2x32xf32, #tpu.memory_space<vmem>>, vector<2x32xf32>,
    } else {
    }
    return
  }
  func.func @transform_0(%arg0: i32, %arg1: i32, %arg2: i32) -> (i32, i32, i32) {
    %c0_i32 = arith.constant 0 : i32
    return %arg0, %arg2, %arg1 : i32, i32, i32
  }
  func.func @transform_1(%arg0: i32, %arg1: i32, %arg2: i32) -> (i32, i32, i32) {
    %c0_i32 = arith.constant 0 : i32
    %c0_i32_0 = arith.constant 0 : i32
    return %arg0, %arg2, %c0_i32 : i32, i32, i32
  }
  func.func @transform_2(%arg0: i32, %arg1: i32, %arg2: i32) -> (i32, i32) {
    %c0_i32 = arith.constant 0 : i32
    %c0_i32_0 = arith.constant 0 : i32
    return %arg0, %c0_i32 : i32, i32
  }
  func.func @transform_3(%arg0: i32, %arg1: i32, %arg2: i32) -> (i32, i32) {
    %c0_i32 = arith.constant 0 : i32
    return %arg0, %arg1 : i32, i32
  }
}

</mosaic_0001>

<llo_original>
// kernel: mean_pooling.1
$region0: #{mean_pooling.1}
  #allocation0 [shape = 'u32[]', space=smem, size = 0x4, offset = 0x4, fixed_abs, tag = 'smem constant byte address 0x4 - core index']
  #allocation1 [shape = 'u32[144,128]{1,0:T(1,128)}', space=vmem, size = 0x12000, scoped, tag = 'internal scratch']
  #allocation2 [shape = 'f32[2,32]{1,0:T(2,128)}', space=vmem, size = 0x400, scoped, tag = 'scratch operand']
  %s0 = inlined_call_operand.vmem [shape: f32[2,8,32], index: 0, kind: input, shape index: {}]
  %s1 = inlined_call_operand.vmem [shape: f32[2,8,1], index: 1, kind: input, shape index: {}]
  %s2 = inlined_call_operand.vmem [shape: f32[2,1], index: 2, kind: input, shape index: {}]
  %s3 = inlined_call_operand.hbm [shape: f32[2,32], index: 3, kind: output, shape index: {}]
  %s4 = sld [smem:[#allocation0]]
  $region30: #{mean_pooling.1} parent=0
    _
  %s6 = ssub.s32 1, %s4
  %s7 = scalar_select 0, %s6, %s4
  $region1: #{mean_pooling.1} parent=0
    #allocation3 [shape = 'u8[1024]{0}', space=vmem, size = 0x400, scoped, tag = 'output window, operand 0, single buffered']
    #allocation4 [shape = 's32[1]{0}', space=sflag, size = 0x4, scoped, tag = 'scoped memory for mean_pooling.1']
    %8 = vsyncpa [#allocation4], 0
    // Predicated region
    $region2: #{mean_pooling.1} parent=1 // pred_check
      _
    $region3: #{mean_pooling.1} parent=1 // pred_check_branch
      %10 = sbr.rel (0) target = $region5
    $region4: #{mean_pooling.1} parent=1 // pred_region
      _
    $region5: #{mean_pooling.1} parent=1 // pred_fallthru
      _
    // Predicated region
    $region6: #{mean_pooling.1} parent=1 // pred_check
      _
    $region7: #{mean_pooling.1} parent=1 // pred_check_branch
      %12 = sbr.rel (0) target = $region9
    $region8: #{mean_pooling.1} parent=1 // pred_region
      _
    $region9: #{mean_pooling.1} parent=1 // pred_fallthru
      _
    // Predicated region
    $region10: #{mean_pooling.1} parent=1 // pred_check
      _
    $region11: #{mean_pooling.1} parent=1 // pred_check_branch
      %14 = sbr.rel (0) target = $region13
    $region12: #{mean_pooling.1} parent=1 // pred_region
      _
    $region13: #{mean_pooling.1} parent=1 // pred_fallthru
      _
    %p15 = scmp.eq.s32.totalorder 0, 0
    // Predicated region
    $region14: #{mean_pooling.1} parent=1 // pred_check
      %p16 = pneg %p15
    $region15: #{mean_pooling.1} parent=1 // pred_check_branch
      %18 = sbr.rel (%p16) target = $region17
    $region16: #{mean_pooling.1} parent=1 // pred_region
      %vm19 = vcmask 254976
      %20 = vst.msk [vmem:[#allocation2] sm:$0x3] %vm19, 0.0
    $region17: #{mean_pooling.1} parent=1 // pred_fallthru
      _
    %v21 = vld [vmem:[%s0] sm:$0xff]
    %v22 = vld [vmem:[%s0 + $0x8] sm:$0xff]
    %v23 = vld [vmem:[%s1] sm:$0xff]
    %v24 = vld [vmem:[%s1 + $0x8] sm:$0xff]
    %26 = vset.pattern.permute.xlu0 0
    %27 = vperm.xlu0 %26, %v23
    %v28 = vpop.permute.xlu0 %27
    %31 = vset.pattern.permute.xlu0 0
    %32 = vperm.xlu0 %31, %v24
    %v33 = vpop.permute.xlu0 %32
    %v35 = vmul.f32 %v21, %v28
    %v36 = vmul.f32 %v22, %v33
    %v37 = vld [vmem:[#allocation2] sm:$0x3]
    %vm38 = vcmask 261120
    %v39 = vsel %vm38, %v35, 0.0
    %v40 = vrot.slane %v39, 4
    %v41 = vadd.f32 %v39, %v40
    %v42 = vrot.slane %v41, 2
    %v43 = vadd.f32 %v41, %v42
    %v44 = vrot.slane %v43, 1
    %v45 = vadd.f32 %v43, %v44
    %v46 = vsel %vm38, %v36, 0.0
    %v47 = vrot.slane %v46, 4
    %v48 = vadd.f32 %v46, %v47
    %v49 = vrot.slane %v48, 2
    %v50 = vadd.f32 %v48, %v49
    %v51 = vrot.slane %v50, 1
    %v52 = vadd.f32 %v50, %v51
    %vm55 = vcmask 1041409
    %v56 = vsel %vm55, %v52, %v45
    %v58 = vadd.f32 %v37, %v56
    %vm59 = vcmask 254976
    %60 = vst.msk [vmem:[#allocation2] sm:$0x3] %vm59, %v58
    // Predicated region
    $region18: #{mean_pooling.1} parent=1 // pred_check
      %p61 = pneg %p15
    $region19: #{mean_pooling.1} parent=1 // pred_check_branch
      %63 = sbr.rel (%p61) target = $region21
    $region20: #{mean_pooling.1} parent=1 // pred_region
      %v64 = vld [vmem:[#allocation2] sm:$0x3]
      %v65 = vld [vmem:[%s2] sm:$0x3]
      %67 = vset.pattern.permute.xlu0 0
      %68 = vperm.xlu0 %67, %v65
      %v69 = vpop.permute.xlu0 %68
      %v71 = vrcp.pop %v69
      %v72 = vmul.f32 %v64, %v71
      %73 = vst.msk [vmem:[#allocation3] sm:$0x3] %vm59, %v72
    $region21: #{mean_pooling.1} parent=1 // pred_fallthru
      _
    // Predicated region
    $region22: #{mean_pooling.1} parent=1 // pred_check
      _
    $region23: #{mean_pooling.1} parent=1 // pred_check_branch
      %75 = sbr.rel (0) target = $region25
    $region24: #{mean_pooling.1} parent=1 // pred_region
      %s77 = ssub.s32 32, 32
      %78 = vsyncadd [#allocation4], %s77
      %s80 = sshll.u32 [#allocation3], 4
      %s81 = int_to_ptr.vmem [resolvable:$true] %s80
      %83 = dma.vmem_to_hbm [thread:$0]  %s81, 32, %s3, [#allocation4]
    $region25: #{mean_pooling.1} parent=1 // pred_fallthru
      _
    // Predicated region
    $region26: #{mean_pooling.1} parent=1 // pred_check
      _
    $region27: #{mean_pooling.1} parent=1 // pred_check_branch
      %85 = sbr.rel (0) target = $region29
    $region28: #{mean_pooling.1} parent=1 // pred_region
      %86 = dma.done [#allocation4], 32
    $region29: #{mean_pooling.1} parent=1 // pred_fallthru
      _
    %87 = vsyncpa [#allocation4], 1

</llo_original>
